<compile_context>
chip_gen: v7x
topology: tpu7x:2x2x1
jax: 0.10.0
libtpu: 0.0.40
codegen_flags: <defaults>
</compile_context>

<pallas_src>
import math
import jax
import jax.numpy as jnp
from jax.experimental import pallas as pl
from jax.experimental.pallas import tpu as pltpu


def _triple(v):
    if isinstance(v, int):
        return (v, v, v)
    return tuple(v)


def _round_up(x, m):
    return ((x + m - 1) // m) * m


# ---------------------------------------------------------------------------
# Kernel: one (tm, tk) x (tk, Cout_pad) MXU matmul per grid step, f32 VMEM
# accumulator carried across the K (reduction) grid axis.
# ---------------------------------------------------------------------------
def _conv_matmul_kernel(x_ref, w_ref, o_ref, acc_ref):
    k = pl.program_id(1)

    @pl.when(k == 0)
    def _():
        acc_ref[...] = jnp.zeros_like(acc_ref)

    acc_ref[...] += jnp.dot(x_ref[...], w_ref[...],
                            preferred_element_type=jnp.float32)

    @pl.when(k == pl.num_programs(1) - 1)
    def _():
        o_ref[...] = acc_ref[...].astype(o_ref.dtype)


def _vmem_budget():
    """Return (tiling budget bytes, VMEM capacity bytes, min parallel blocks)."""
    cap = 64 << 20                       # conservative fallback (v7x per-core)
    try:
        cap = int(pltpu.get_tpu_info().vmem_capacity_bytes)
    except Exception:                    # interpret mode / older runtimes
        pass
    if cap <= (64 << 20):
        # v7x-class: 64 MiB per TensorCore, 2 TensorCores -> want >=2 blocks
        # per core on the parallel axis and a smaller tiling budget.
        return (24 << 20), cap, 4
    # v5e / v6e: 128 MiB physical VMEM (scoped default is much lower; we raise
    # it explicitly via vmem_limit_bytes below).
    return (48 << 20), cap, 2


def _select_tiles(M, K_pad, Cout_pad, in_bytes, out_bytes, budget,
                  min_m_blocks):
    """Pick (tm, tk): biggest tm first (measured >=85% of HBM roofline at
    512-1024 rows), then biggest tk (tk == K_pad -> resident filter, single K
    step).  Working-set estimate: double-buffered x / w / out tiles, the f32
    accumulator, plus ~1 MiB of Mosaic internal scratch."""
    def need(tm, tk):
        return (2 * tm * tk * in_bytes            # x tiles (double-buffered)
                + 2 * tk * Cout_pad * in_bytes    # w tiles (double-buffered)
                + 2 * tm * Cout_pad * out_bytes   # out tiles (double-buffered)
                + tm * Cout_pad * 4               # f32 accumulator scratch
                + (1 << 20))                      # internal scratch headroom
    tm_cands = [t for t in (1024, 512, 256, 128)
                if t <= max(128, _round_up(M, 128))]
    for tm in tm_cands:
        m_blocks = (M + tm - 1) // tm
        # Keep enough blocks on the parallel axis whenever a smaller tm can
        # still provide them (dual-TensorCore parts want >=2 blocks per core).
        if m_blocks < min_m_blocks and (M + 127) // 128 >= min_m_blocks:
            continue
        for tk in [K_pad] + [t for t in (2048, 1024, 512, 256, 128)
                             if t < K_pad]:
            n = need(tm, tk)
            if n <= budget:
                return tm, tk, n
    tm, tk = 128, 128
    return tm, tk, need(tm, tk)


def conv3d_pallas(x, weight, stride=1, padding=0, dilation=1, groups=1,
                  compute_dtype=jnp.bfloat16, data_format="NCDHW"):
    """3D convolution matching torch.nn.functional.conv3d (groups=1, no bias).

    compute_dtype: MXU input dtype.  Defaults to bf16 on every TPU generation
      (the kernel has no element-wise bf16 work, so this is v5e-safe too).
      Pass jnp.float32 (or None -> x.dtype) for an exact f32 path.
      Accumulation is always f32; output dtype matches x.dtype.
    data_format: "NCDHW" (PyTorch boundary, default) or "NDHWC" (channels-last
      fast path that skips both wrapper transposes).
    """
    assert groups == 1  # TODO(synk): grouped conv not implemented (module default groups=1)
    assert data_format in ("NCDHW", "NDHWC")
    stride = _triple(stride)
    padding = _triple(padding)
    dilation = _triple(dilation)

    if data_format == "NCDHW":
        N, Cin, D, H, W = x.shape
    else:
        N, D, H, W, Cin = x.shape
    Cout, Cin_w, KD, KH, KW = weight.shape
    assert Cin == Cin_w
    sd, sh, sw = stride
    pd, ph, pw = padding
    dd, dh, dw = dilation

    Do = (D + 2 * pd - dd * (KD - 1) - 1) // sd + 1
    Ho = (H + 2 * ph - dh * (KH - 1) - 1) // sh + 1
    Wo = (W + 2 * pw - dw * (KW - 1) - 1) // sw + 1

    out_dtype = x.dtype
    in_dtype = (jnp.dtype(compute_dtype) if compute_dtype is not None
                else jnp.dtype(x.dtype))

    # --- wrapper glue: channels-last + compute-dtype cast BEFORE im2col ------
    xl = x if data_format == "NDHWC" else jnp.transpose(x, (0, 2, 3, 4, 1))
    xl = xl.astype(in_dtype)             # cast before the T-fold gather: halves
    xl = jnp.pad(xl, ((0, 0), (pd, pd), (ph, ph), (pw, pw), (0, 0)))

    # One strided view per kernel tap, folded into the contraction axis:
    # layout (N, Do, Ho, Wo, T, Cin) -> (M, K) with K index = t*Cin + c,
    # matching the filter flattening below.
    taps = []
    for kd in range(KD):
        for kh in range(KH):
            for kw in range(KW):
                taps.append(jax.lax.slice(
                    xl,
                    (0, kd * dd, kh * dh, kw * dw, 0),
                    (N,
                     kd * dd + (Do - 1) * sd + 1,
                     kh * dh + (Ho - 1) * sh + 1,
                     kw * dw + (Wo - 1) * sw + 1,
                     Cin),
                    (1, sd, sh, sw, 1)))
    T = KD * KH * KW
    M = N * Do * Ho * Wo
    K = T * Cin
    # TODO(synk): this materialized (M, T*Cin) slab is still the dominant HBM
    # cost for big activations; replacing it needs in-kernel halo DMA.
    x_col = jnp.stack(taps, axis=4).reshape(M, K)

    # Filter: (Cout, Cin, KD, KH, KW) -> (KD, KH, KW, Cin, Cout) -> (K, Cout)
    w_col = jnp.transpose(weight, (2, 3, 4, 1, 0)).reshape(K, Cout)
    w_col = w_col.astype(in_dtype)

    # --- lane-dense padding & per-chip tiling --------------------------------
    K_pad = _round_up(K, 128)
    Cout_pad = _round_up(Cout, 128)
    out_bytes = jnp.dtype(out_dtype).itemsize

    budget, cap, min_m_blocks = _vmem_budget()
    tm, tk, need = _select_tiles(M, K_pad, Cout_pad, in_dtype.itemsize,
                                 out_bytes, budget, min_m_blocks)

    K_grid = _round_up(K_pad, tk)
    n_m = (M + tm - 1) // tm
    if min_m_blocks >= 4 and n_m > 1 and n_m % 2 == 1:
        n_m += 1                         # even block count: keep both TCs busy
    M_pad = n_m * tm
    n_k = K_grid // tk

    x_col = jnp.pad(x_col, ((0, M_pad - M), (0, K_grid - K)))
    w_col = jnp.pad(w_col, ((0, K_grid - K), (0, Cout_pad - Cout)))

    # Make the compiler's scoped-VMEM limit agree with the tiling heuristic
    # (raised well above the 16/32 MiB defaults, but kept below capacity).
    vmem_limit = int(max(32 << 20, need + (8 << 20)))
    vmem_limit = int(min(vmem_limit, max(cap - (8 << 20), 16 << 20)))

    cost = pl.CostEstimate(
        flops=2 * M * K * Cout,
        transcendentals=0,
        bytes_accessed=int(
            x_col.size * x_col.dtype.itemsize
            + w_col.size * w_col.dtype.itemsize * (n_m if n_k > 1 else 1)
            + M_pad * Cout_pad * out_bytes))

    out = pl.pallas_call(
        _conv_matmul_kernel,
        out_shape=jax.ShapeDtypeStruct((M_pad, Cout_pad), out_dtype),
        grid_spec=pltpu.PrefetchScalarGridSpec(
            num_scalar_prefetch=0,
            grid=(n_m, n_k),
            in_specs=[
                pl.BlockSpec((tm, tk), lambda mi, ki: (mi, ki)),
                # ki-only index: filter streamed along the reduction axis;
                # when n_k == 1 the index is grid-invariant and the whole
                # filter is DMA'd into VMEM exactly once.
                pl.BlockSpec((tk, Cout_pad), lambda mi, ki: (ki, 0)),
            ],
            out_specs=pl.BlockSpec((tm, Cout_pad), lambda mi, ki: (mi, 0)),
            scratch_shapes=[pltpu.VMEM((tm, Cout_pad), jnp.float32)],
        ),
        compiler_params=pltpu.CompilerParams(
            dimension_semantics=("parallel", "arbitrary"),
            vmem_limit_bytes=vmem_limit),
        cost_estimate=cost,
    )(x_col, w_col)

    out = out[:M, :Cout].reshape(N, Do, Ho, Wo, Cout)
    if data_format == "NDHWC":
        return out                       # channels-last consumers skip the transpose
    return jnp.transpose(out, (0, 4, 1, 2, 3))


def init_conv3d_weight(key, cin, cout, kernel):
    """Matches Conv3d.reset_parameters: U(-stdv, stdv), stdv = 1/sqrt(cin*prod(k))."""
    kernel = _triple(kernel)
    n = cin
    for k in kernel:
        n *= k
    stdv = 1.0 / math.sqrt(n)
    return jax.random.uniform(key, (cout, cin) + kernel,
                              dtype=jnp.float32, minval=-stdv, maxval=stdv)


if __name__ == "__main__":
    # Small shapes: batch=2, cin=4, cout=8, D=H=W=8, kernel=3, stride=1, padding=1.
    key = jax.random.PRNGKey(0)
    kx, kw = jax.random.split(key)

    cin, cout, kernel, stride, padding, dilation = 4, 8, 3, 1, 1, 1
    x = jax.random.normal(kx, (2, cin, 8, 8, 8), dtype=jnp.float32)
    weight = init_conv3d_weight(kw, cin, cout, kernel)

    # f32 MXU-input path — exact check against XLA's native conv.
    y32 = conv3d_pallas(x, weight, stride=stride, padding=padding,
                        dilation=dilation, compute_dtype=jnp.float32)
    y32 = jax.block_until_ready(y32)
    y_ref = jax.lax.conv_general_dilated(
        x, weight,
        window_strides=_triple(stride),
        padding=[(padding, padding)] * 3,
        rhs_dilation=_triple(dilation),
        dimension_numbers=("NCDHW", "OIDHW", "NCDHW"))
    assert y32.shape == y_ref.shape, (y32.shape, y_ref.shape)
    assert jnp.allclose(y32, y_ref, rtol=1e-4, atol=1e-5), \
        float(jnp.max(jnp.abs(y32 - y_ref)))

    # Default path: bf16 MXU inputs (cast before im2col), f32 accumulation.
    y_bf = conv3d_pallas(x, weight, stride=stride, padding=padding,
                         dilation=dilation)
    y_bf = jax.block_until_ready(y_bf)
    y_bf_ref = jax.lax.conv_general_dilated(
        x.astype(jnp.bfloat16), weight.astype(jnp.bfloat16),
        window_strides=_triple(stride),
        padding=[(padding, padding)] * 3,
        rhs_dilation=_triple(dilation),
        dimension_numbers=("NCDHW", "OIDHW", "NCDHW"),
        preferred_element_type=jnp.float32)
    assert jnp.allclose(y_bf, y_bf_ref, rtol=2e-2, atol=2e-2), \
        float(jnp.max(jnp.abs(y_bf - y_bf_ref)))

    # Channels-last fast path (skips both wrapper transposes); must match the
    # default-path result exactly (same kernel, same data).
    x_cl = jnp.transpose(x, (0, 2, 3, 4, 1))
    y_cl = conv3d_pallas(x_cl, weight, stride=stride, padding=padding,
                         dilation=dilation, data_format="NDHWC")
    y_cl = jax.block_until_ready(y_cl)
    assert jnp.allclose(jnp.transpose(y_cl, (0, 4, 1, 2, 3)), y_bf,
                        rtol=1e-6, atol=1e-6)

    print("KERNEL_OK")
</pallas_src>

<mosaic_0001>
module attributes {stable_mosaic.version = 11 : i64} {
  func.func @_conv_matmul_kernel(%arg0: i32, %arg1: i32, %arg2: memref<256x128xf32, #tpu.memory_space<vmem>>, %arg3: memref<128x128xf32, #tpu.memory_space<vmem>>, %arg4: memref<256x128xf32, #tpu.memory_space<vmem>>, %arg5: memref<256x128xf32, #tpu.memory_space<vmem>>) attributes {dimension_semantics = [#tpu.dimension_semantics<parallel>, #tpu.dimension_semantics<arbitrary>], iteration_bounds = array<i64: 4, 1>, scalar_prefetch = 0 : i64, scratch_operands = 1 : i64, tpu.core_type = #tpu.core_type<tc>, window_params = [{transform_indices = @transform_0, window_bounds = array<i64: 256, 128>}, {transform_indices = @transform_1, window_bounds = array<i64: 128, 128>}, {transform_indices = @transform_2, window_bounds = array<i64: 256, 128>}]} {
    %c0_i32 = arith.constant 0 : i32
    %0 = arith.cmpi eq, %arg1, %c0_i32 : i32
    %1 = arith.extui %0 : i1 to i32
    %c0_i32_0 = arith.constant 0 : i32
    %2 = arith.cmpi ne, %1, %c0_i32_0 : i32
    scf.if %2 {
      %cst_10 = arith.constant 0.000000e+00 : f32
      %12 = vector.broadcast %cst_10 : f32 to vector<256x128xf32>
      %c0_11 = arith.constant 0 : index
      %c0_12 = arith.constant 0 : index
      %13 = vector.load %arg5[%c0_11, %c0_12] : memref<256x128xf32, #tpu.memory_space<vmem>>, vector<256x128xf32>
      tpu.vector_store %arg5[%c0_11, %c0_12], %12 {strides = array<i32>} : memref<256x128xf32, #tpu.memory_space<vmem>>, vector<256x128xf32>,
    } else {
    }
    %c0 = arith.constant 0 : index
    %c0_1 = arith.constant 0 : index
    %3 = vector.load %arg5[%c0, %c0_1] : memref<256x128xf32, #tpu.memory_space<vmem>>, vector<256x128xf32>
    %c0_2 = arith.constant 0 : index
    %c0_3 = arith.constant 0 : index
    %4 = vector.load %arg2[%c0_2, %c0_3] : memref<256x128xf32, #tpu.memory_space<vmem>>, vector<256x128xf32>
    %c0_4 = arith.constant 0 : index
    %c0_5 = arith.constant 0 : index
    %5 = vector.load %arg3[%c0_4, %c0_5] : memref<128x128xf32, #tpu.memory_space<vmem>>, vector<128x128xf32>
    %cst = arith.constant dense<0.000000e+00> : vector<256x128xf32>
    %6 = tpu.matmul %4, %5, %cst {dimension_numbers = #tpu.dot_dimension_numbers<[1], [0], [0], [1], [0, 0, 1, 1], [], []>} : vector<256x128xf32>, vector<128x128xf32>, vector<256x128xf32> -> vector<256x128xf32>
    %7 = arith.addf %3, %6 : vector<256x128xf32>
    %c0_6 = arith.constant 0 : index
    %c0_7 = arith.constant 0 : index
    %8 = vector.load %arg5[%c0_6, %c0_7] : memref<256x128xf32, #tpu.memory_space<vmem>>, vector<256x128xf32>
    tpu.vector_store %arg5[%c0_6, %c0_7], %7 {strides = array<i32>} : memref<256x128xf32, #tpu.memory_space<vmem>>, vector<256x128xf32>,
    %c0_i32_8 = arith.constant 0 : i32
    %9 = arith.cmpi eq, %arg1, %c0_i32_8 : i32
    %10 = arith.extui %9 : i1 to i32
    %c0_i32_9 = arith.constant 0 : i32
    %11 = arith.cmpi ne, %10, %c0_i32_9 : i32
    scf.if %11 {
      %c0_10 = arith.constant 0 : index
      %c0_11 = arith.constant 0 : index
      %12 = vector.load %arg5[%c0_10, %c0_11] : memref<256x128xf32, #tpu.memory_space<vmem>>, vector<256x128xf32>
      %c0_12 = arith.constant 0 : index
      %c0_13 = arith.constant 0 : index
      %13 = vector.load %arg4[%c0_12, %c0_13] : memref<256x128xf32, #tpu.memory_space<vmem>>, vector<256x128xf32>
      tpu.vector_store %arg4[%c0_12, %c0_13], %12 {strides = array<i32>} : memref<256x128xf32, #tpu.memory_space<vmem>>, vector<256x128xf32>,
    } else {
    }
    return
  }
  func.func @transform_0(%arg0: i32, %arg1: i32) -> (i32, i32) {
    %c0_i32 = arith.constant 0 : i32
    return %arg0, %arg1 : i32, i32
  }
  func.func @transform_1(%arg0: i32, %arg1: i32) -> (i32, i32) {
    %c0_i32 = arith.constant 0 : i32
    %c0_i32_0 = arith.constant 0 : i32
    return %arg1, %c0_i32 : i32, i32
  }
  func.func @transform_2(%arg0: i32, %arg1: i32) -> (i32, i32) {
    %c0_i32 = arith.constant 0 : i32
    %c0_i32_0 = arith.constant 0 : i32
    return %arg0, %c0_i32 : i32, i32
  }
}

</mosaic_0001>

<llo_original>
// kernel: tpu_custom_call.1
$region0: #{tpu_custom_call.1}
  #allocation0 [shape = 'u32[]', space=smem, size = 0x4, offset = 0x4, fixed_abs, tag = 'smem constant byte address 0x4 - core index']
  #allocation1 [shape = 'u32[144,128]{1,0:T(1,128)}', space=vmem, size = 0x12000, scoped, tag = 'internal scratch']
  #allocation2 [shape = 'f32[256,128]{1,0:T(8,128)}', space=vmem, size = 0x20000, scoped, tag = 'scratch operand']
  %s0 = inlined_call_operand.hbm [shape: f32[1024,128], index: 0, kind: input, shape index: {}]
  %s1 = inlined_call_operand.hbm [shape: f32[128,128], index: 1, kind: input, shape index: {}]
  %s2 = inlined_call_operand.hbm [shape: f32[1024,128], index: 2, kind: output, shape index: {}]
  %s3 = sld [smem:[#allocation0]]
  $region57: #{tpu_custom_call.1} parent=0
    _
  %s5 = ssub.s32 1, %s3
  %s6 = scalar_select 0, %s5, %s3
  $region1: #{tpu_custom_call.1} parent=0
    #allocation3 [shape = 'u8[262144]{0}', space=vmem, size = 0x40000, scoped, tag = 'input window, operand 0']
    #allocation4 [shape = 's32[2]{0}', space=sflag, size = 0x8, scoped, tag = 'scoped memory for tpu_custom_call.1']
    #allocation5 [shape = 's32[2]{0}', space=sflag, size = 0x8, scoped, tag = 'scoped memory for tpu_custom_call.1']
    #allocation6 [shape = 'u8[65536]{0}', space=vmem, size = 0x10000, scoped, tag = 'input window, operand 1, single buffered']
    #allocation7 [shape = 's32[1]{0}', space=sflag, size = 0x4, scoped, tag = 'scoped memory for tpu_custom_call.1']
    #allocation8 [shape = 'u8[262144]{0}', space=vmem, size = 0x40000, scoped, tag = 'output window, operand 0']
    %7 = vsyncpa [#allocation4], 0
    %s8 = scalar_lea.sflag [#allocation4], 1
    %9 = vsyncpa %s8, 0
    %10 = vsyncpa [#allocation7], 0
    %11 = vsyncpa [#allocation5], 0
    %s12 = scalar_lea.sflag [#allocation5], 1
    %13 = vsyncpa %s12, 0
    loop: start=0, step=1, limit=6
    $region2: #{tpu_custom_call.1} parent=1 // loop_pre_header
      _
    $region3: #{tpu_custom_call.1} parent=1 // loop_header
      %s15 = sphi 0, %s19
      %p16 = scmp.ge.s32.totalorder %s15, 6
      %s22 = sphi 0, %s34
      %s23 = sphi 0, %s30
      %s24 = sphi 0, %s22
      %s25 = sphi 0, %s23
      %s26 = sphi 0, %s24
      %s27 = sphi 0, %s25
      %s39 = sphi 0, %s41
      %s42 = sphi 0, %s39
      %s43 = sphi 0, %s42
      %s59 = sphi 0, %s43
      %s65 = sphi 0, %s67
      %s68 = sphi 0, %s65
      %s69 = sphi 0, %s68
      %s85 = sphi 0, %s69
      %s91 = sphi 0, %s93
      %s94 = sphi 0, %s91
      %s95 = sphi 0, %s94
      %s111 = sphi 0, %s95
    $region4: #{tpu_custom_call.1} parent=1 // loop_header_branch
      %18 = sbr.rel (%p16) target = $region8
    $region5: #{tpu_custom_call.1} parent=1 // loop_body
      %s20 = ssub.s32 %s15, 1
      %s21 = ssub.s32 %s15, 2
      %s28 = sadd.s32 1, %s23
      %p29 = scmp.ge.s32.totalorder %s28, 1
      %s30 = scalar_select %p29, 0, %s28
      %s31 = sadd.s32 1, %s22
      %s32 = scalar_select %p29, %s31, %s22
      %p33 = scmp.ge.s32.totalorder %s32, 4
      %s34 = scalar_select %p33, 0, %s32
      %s35 = ssub.s32 %s22, %s34
      %s36 = ssub.s32 %s23, %s30
      %s37 = sor.u32 %s35, %s36
      %p38 = scmp.eq.s32.totalorder %s37, 0
      %s40 = sadd.s32 %s39, 1
      %s41 = scalar_select %p38, %s39, %s40
      %p44 = pneg %p38
      %p45 = scmp.eq.s32.totalorder %s15, 3
      %p46 = por %p44, %p45
      %p47 = scmp.ne.s32.totalorder %s39, %s42
      %p48 = scmp.eq.s32.totalorder %s15, 0
      %p49 = por %p47, %p48
      %p50 = scmp.ne.s32.totalorder %s39, %s42
      %p51 = scmp.eq.s32.totalorder %s20, 3
      %p52 = por %p50, %p51
      %p53 = scmp.ne.s32.totalorder %s42, %s43
      %p54 = scmp.eq.s32.totalorder %s20, 0
      %p55 = por %p53, %p54
      %p56 = scmp.ne.s32.totalorder %s42, %s43
      %p57 = scmp.eq.s32.totalorder %s21, 3
      %p58 = por %p56, %p57
      %p60 = scmp.ne.s32.totalorder %s43, %s59
      %p61 = scmp.eq.s32.totalorder %s21, 0
      %p62 = por %p60, %p61
      %s63 = ssub.s32 %s23, %s30
      %p64 = scmp.eq.s32.totalorder %s63, 0
      %s66 = sadd.s32 %s65, 1
      %s67 = scalar_select %p64, %s65, %s66
      %p70 = pneg %p64
      %p71 = scmp.eq.s32.totalorder %s15, 3
      %p72 = por %p70, %p71
      %p73 = scmp.ne.s32.totalorder %s65, %s68
      %p74 = scmp.eq.s32.totalorder %s15, 0
      %p75 = por %p73, %p74
      %p76 = scmp.ne.s32.totalorder %s65, %s68
      %p77 = scmp.eq.s32.totalorder %s20, 3
      %p78 = por %p76, %p77
      %p79 = scmp.ne.s32.totalorder %s68, %s69
      %p80 = scmp.eq.s32.totalorder %s20, 0
      %p81 = por %p79, %p80
      %p82 = scmp.ne.s32.totalorder %s68, %s69
      %p83 = scmp.eq.s32.totalorder %s21, 3
      %p84 = por %p82, %p83
      %p86 = scmp.ne.s32.totalorder %s69, %s85
      %p87 = scmp.eq.s32.totalorder %s21, 0
      %p88 = por %p86, %p87
      %s89 = ssub.s32 %s22, %s34
      %p90 = scmp.eq.s32.totalorder %s89, 0
      %s92 = sadd.s32 %s91, 1
      %s93 = scalar_select %p90, %s91, %s92
      %p96 = pneg %p90
      %p97 = scmp.eq.s32.totalorder %s15, 3
      %p98 = por %p96, %p97
      %p99 = scmp.ne.s32.totalorder %s91, %s94
      %p100 = scmp.eq.s32.totalorder %s15, 0
      %p101 = por %p99, %p100
      %p102 = scmp.ne.s32.totalorder %s91, %s94
      %p103 = scmp.eq.s32.totalorder %s20, 3
      %p104 = por %p102, %p103
      %p105 = scmp.ne.s32.totalorder %s94, %s95
      %p106 = scmp.eq.s32.totalorder %s20, 0
      %p107 = por %p105, %p106
      %p108 = scmp.ne.s32.totalorder %s94, %s95
      %p109 = scmp.eq.s32.totalorder %s21, 3
      %p110 = por %p108, %p109
      %p112 = scmp.ne.s32.totalorder %s95, %s111
      %p113 = scmp.eq.s32.totalorder %s21, 0
      %p114 = por %p112, %p113
      %p115 = scmp.le.s32.totalorder 1, %s15
      %p116 = scmp.lt.s32.totalorder %s15, 5
      %p117 = pnand %p115, %p116
      %p118 = pneg %p117
      // Predicated region
      $region9: #{tpu_custom_call.1} parent=5 // pred_check
        _
      $region10: #{tpu_custom_call.1} parent=5 // pred_check_branch
        %120 = sbr.rel (%p117) target = $region12
      $region11: #{tpu_custom_call.1} parent=5 // pred_region
        %s121 = ssub.s32 %s15, 1
        // Predicated region
        $region13: #{tpu_custom_call.1} parent=11 // pred_check
          %p122 = pneg %p81
        $region14: #{tpu_custom_call.1} parent=11 // pred_check_branch
          %124 = sbr.rel (%p122) target = $region16
        $region15: #{tpu_custom_call.1} parent=11 // pred_region
          %s125 = smul.u32 16, %s25
          %s127 = ssub.s32 2048, 2048
          %128 = vsyncadd [#allocation7], %s127
          %s129 = smul.addr %s125, 128
          %s130 = scalar_lea.hbm %s1, %s129
          %s131 = sshll.u32 [#allocation6], 4
          %s132 = int_to_ptr.vmem [resolvable:$true] %s131
          %137 = dma.hbm_to_vmem [thread:$0]  %s130, 2048, %s132, [#allocation7], 128, 128, 8
        $region16: #{tpu_custom_call.1} parent=11 // pred_fallthru
          _
      $region12: #{tpu_custom_call.1} parent=5 // pred_fallthru
        _
      %p138 = scmp.lt.s32.totalorder %s15, 4
      // Predicated region
      $region17: #{tpu_custom_call.1} parent=5 // pred_check
        %p139 = pneg %p138
      $region18: #{tpu_custom_call.1} parent=5 // pred_check_branch
        %141 = sbr.rel (%p139) target = $region20
      $region19: #{tpu_custom_call.1} parent=5 // pred_region
        // Predicated region
        $region21: #{tpu_custom_call.1} parent=19 // pred_check
          %p142 = pneg %p49
        $region22: #{tpu_custom_call.1} parent=19 // pred_check_branch
          %144 = sbr.rel (%p142) target = $region24
        $region23: #{tpu_custom_call.1} parent=19 // pred_region
          %s145 = sand.u32 %s39, 1
          %s146 = scalar_lea.sflag [#allocation4], %s145
          %s147 = sand.u32 %s39, 1
          %s148 = smul.addr %s147, 256
          %s149 = scalar_lea.vmem [#allocation3], %s148
          %s150 = smul.u32 32, %s22
          %s152 = ssub.s32 4096, 4096
          %153 = vsyncadd %s146, %s152
          %s154 = sadd.s32 %s23, %s150
          %s155 = smul.addr %s154, 128
          %s156 = scalar_lea.hbm %s0, %s155
          %s157 = sshll.u32 %s149, 4
          %s158 = int_to_ptr.vmem [resolvable:$true] %s157
          %163 = dma.hbm_to_vmem [thread:$0]  %s156, 4096, %s158, %s146, 128, 128, 8
        $region24: #{tpu_custom_call.1} parent=19 // pred_fallthru
          _
      $region20: #{tpu_custom_call.1} parent=5 // pred_fallthru
        _
      %p164 = scmp.le.s32.totalorder 1, %s15
      %p165 = scmp.lt.s32.totalorder %s15, 5
      %p166 = pnand %p164, %p165
      %p167 = pneg %p166
      // Predicated region
      $region25: #{tpu_custom_call.1} parent=5 // pred_check
        _
      $region26: #{tpu_custom_call.1} parent=5 // pred_check_branch
        %169 = sbr.rel (%p166) target = $region28
      $region27: #{tpu_custom_call.1} parent=5 // pred_region
        %s170 = ssub.s32 %s15, 1
        %s171 = sand.u32 %s42, 1
        %s172 = scalar_lea.sflag [#allocation4], %s171
        %s173 = sand.u32 %s42, 1
        %s174 = smul.addr %s173, 256
        %s175 = scalar_lea.vmem [#allocation3], %s174
        // Predicated region
        $region29: #{tpu_custom_call.1} parent=27 // pred_check
          %p176 = pneg %p55
        $region30: #{tpu_custom_call.1} parent=27 // pred_check_branch
          %178 = sbr.rel (%p176) target = $region32
        $region31: #{tpu_custom_call.1} parent=27 // pred_region
          %179 = dma.done %s172, 4096
        $region32: #{tpu_custom_call.1} parent=27 // pred_fallthru
          _
        // Predicated region
        $region33: #{tpu_custom_call.1} parent=27 // pred_check
          %p180 = pneg %p81
        $region34: #{tpu_custom_call.1} parent=27 // pred_check_branch
          %182 = sbr.rel (%p180) target = $region36
        $region35: #{tpu_custom_call.1} parent=27 // pred_region
          %183 = dma.done [#allocation7], 2048
        $region36: #{tpu_custom_call.1} parent=27 // pred_fallthru
          _
        %s184 = sand.u32 %s42, 1
        %s185 = scalar_lea.sflag [#allocation4], %s184
        %s186 = sand.u32 %s42, 1
        %s187 = smul.addr %s186, 256
        %s188 = scalar_lea.vmem [#allocation3], %s187
        %p189 = pneg %p55
        %p190 = pneg %p52
        %p191 = pneg %p81
        %p192 = pneg %p78
        %p193 = pneg %p107
        %p194 = pneg %p104
        %s195 = sand.u32 %s94, 1
        %s196 = scalar_lea.sflag [#allocation5], %s195
        %s197 = sand.u32 %s94, 1
        %s198 = smul.addr %s197, 256
        %s199 = scalar_lea.vmem [#allocation8], %s198
        %s200 = smul.u32 32, %s24
        %s201 = smul.u32 16, %s25
        %s202 = smul.u32 32, %s24
        %p203 = scmp.eq.s32.totalorder %s25, 0
        // Predicated region
        $region37: #{tpu_custom_call.1} parent=27 // pred_check
          %p204 = pneg %p203
        $region38: #{tpu_custom_call.1} parent=27 // pred_check_branch
          %206 = sbr.rel (%p204) target = $region40
        $region39: #{tpu_custom_call.1} parent=27 // pred_region
          %207 = vst [vmem:[#allocation2] sm:$0xff] 0.0
          %208 = vst [vmem:[#allocation2 + $0x8] sm:$0xff] 0.0
          %209 = vst [vmem:[#allocation2 + $0x10] sm:$0xff] 0.0
          %210 = vst [vmem:[#allocation2 + $0x18] sm:$0xff] 0.0
          %211 = vst [vmem:[#allocation2 + $0x20] sm:$0xff] 0.0
          %212 = vst [vmem:[#allocation2 + $0x28] sm:$0xff] 0.0
          %213 = vst [vmem:[#allocation2 + $0x30] sm:$0xff] 0.0
          %214 = vst [vmem:[#allocation2 + $0x38] sm:$0xff] 0.0
          %215 = vst [vmem:[#allocation2 + $0x40] sm:$0xff] 0.0
          %216 = vst [vmem:[#allocation2 + $0x48] sm:$0xff] 0.0
          %217 = vst [vmem:[#allocation2 + $0x50] sm:$0xff] 0.0
          %218 = vst [vmem:[#allocation2 + $0x58] sm:$0xff] 0.0
          %219 = vst [vmem:[#allocation2 + $0x60] sm:$0xff] 0.0
          %220 = vst [vmem:[#allocation2 + $0x68] sm:$0xff] 0.0
          %221 = vst [vmem:[#allocation2 + $0x70] sm:$0xff] 0.0
          %222 = vst [vmem:[#allocation2 + $0x78] sm:$0xff] 0.0
          %223 = vst [vmem:[#allocation2 + $0x80] sm:$0xff] 0.0
          %224 = vst [vmem:[#allocation2 + $0x88] sm:$0xff] 0.0
          %225 = vst [vmem:[#allocation2 + $0x90] sm:$0xff] 0.0
          %226 = vst [vmem:[#allocation2 + $0x98] sm:$0xff] 0.0
          %227 = vst [vmem:[#allocation2 + $0xa0] sm:$0xff] 0.0
          %228 = vst [vmem:[#allocation2 + $0xa8] sm:$0xff] 0.0
          %229 = vst [vmem:[#allocation2 + $0xb0] sm:$0xff] 0.0
          %230 = vst [vmem:[#allocation2 + $0xb8] sm:$0xff] 0.0
          %231 = vst [vmem:[#allocation2 + $0xc0] sm:$0xff] 0.0
          %232 = vst [vmem:[#allocation2 + $0xc8] sm:$0xff] 0.0
          %233 = vst [vmem:[#allocation2 + $0xd0] sm:$0xff] 0.0
          %234 = vst [vmem:[#allocation2 + $0xd8] sm:$0xff] 0.0
          %235 = vst [vmem:[#allocation2 + $0xe0] sm:$0xff] 0.0
          %236 = vst [vmem:[#allocation2 + $0xe8] sm:$0xff] 0.0
          %237 = vst [vmem:[#allocation2 + $0xf0] sm:$0xff] 0.0
          %238 = vst [vmem:[#allocation2 + $0xf8] sm:$0xff] 0.0
        $region40: #{tpu_custom_call.1} parent=27 // pred_fallthru
          _
        %v239 = vld [vmem:[#allocation2] sm:$0xff]
        %v240 = vld [vmem:[#allocation2 + $0x8] sm:$0xff]
        %v241 = vld [vmem:[#allocation2 + $0x10] sm:$0xff]
        %v242 = vld [vmem:[#allocation2 + $0x18] sm:$0xff]
        %v243 = vld [vmem:[#allocation2 + $0x20] sm:$0xff]
        %v244 = vld [vmem:[#allocation2 + $0x28] sm:$0xff]
        %v245 = vld [vmem:[#allocation2 + $0x30] sm:$0xff]
        %v246 = vld [vmem:[#allocation2 + $0x38] sm:$0xff]
        %v247 = vld [vmem:[#allocation2 + $0x40] sm:$0xff]
        %v248 = vld [vmem:[#allocation2 + $0x48] sm:$0xff]
        %v249 = vld [vmem:[#allocation2 + $0x50] sm:$0xff]
        %v250 = vld [vmem:[#allocation2 + $0x58] sm:$0xff]
        %v251 = vld [vmem:[#allocation2 + $0x60] sm:$0xff]
        %v252 = vld [vmem:[#allocation2 + $0x68] sm:$0xff]
        %v253 = vld [vmem:[#allocation2 + $0x70] sm:$0xff]
        %v254 = vld [vmem:[#allocation2 + $0x78] sm:$0xff]
        %v255 = vld [vmem:[#allocation2 + $0x80] sm:$0xff]
        %v256 = vld [vmem:[#allocation2 + $0x88] sm:$0xff]
        %v257 = vld [vmem:[#allocation2 + $0x90] sm:$0xff]
        %v258 = vld [vmem:[#allocation2 + $0x98] sm:$0xff]
        %v259 = vld [vmem:[#allocation2 + $0xa0] sm:$0xff]
        %v260 = vld [vmem:[#allocation2 + $0xa8] sm:$0xff]
        %v261 = vld [vmem:[#allocation2 + $0xb0] sm:$0xff]
        %v262 = vld [vmem:[#allocation2 + $0xb8] sm:$0xff]
        %v263 = vld [vmem:[#allocation2 + $0xc0] sm:$0xff]
        %v264 = vld [vmem:[#allocation2 + $0xc8] sm:$0xff]
        %v265 = vld [vmem:[#allocation2 + $0xd0] sm:$0xff]
        %v266 = vld [vmem:[#allocation2 + $0xd8] sm:$0xff]
        %v267 = vld [vmem:[#allocation2 + $0xe0] sm:$0xff]
        %v268 = vld [vmem:[#allocation2 + $0xe8] sm:$0xff]
        %v269 = vld [vmem:[#allocation2 + $0xf0] sm:$0xff]
        %v270 = vld [vmem:[#allocation2 + $0xf8] sm:$0xff]
        %v271 = vld [vmem:[%s175] sm:$0xff]
        %v272 = vld [vmem:[%s175 + $0x8] sm:$0xff]
        %v273 = vld [vmem:[%s175 + $0x10] sm:$0xff]
        %v274 = vld [vmem:[%s175 + $0x18] sm:$0xff]
        %v275 = vld [vmem:[%s175 + $0x20] sm:$0xff]
        %v276 = vld [vmem:[%s175 + $0x28] sm:$0xff]
        %v277 = vld [vmem:[%s175 + $0x30] sm:$0xff]
        %v278 = vld [vmem:[%s175 + $0x38] sm:$0xff]
        %v279 = vld [vmem:[%s175 + $0x40] sm:$0xff]
        %v280 = vld [vmem:[%s175 + $0x48] sm:$0xff]
        %v281 = vld [vmem:[%s175 + $0x50] sm:$0xff]
        %v282 = vld [vmem:[%s175 + $0x58] sm:$0xff]
        %v283 = vld [vmem:[%s175 + $0x60] sm:$0xff]
        %v284 = vld [vmem:[%s175 + $0x68] sm:$0xff]
        %v285 = vld [vmem:[%s175 + $0x70] sm:$0xff]
        %v286 = vld [vmem:[%s175 + $0x78] sm:$0xff]
        %v287 = vld [vmem:[%s175 + $0x80] sm:$0xff]
        %v288 = vld [vmem:[%s175 + $0x88] sm:$0xff]
        %v289 = vld [vmem:[%s175 + $0x90] sm:$0xff]
        %v290 = vld [vmem:[%s175 + $0x98] sm:$0xff]
        %v291 = vld [vmem:[%s175 + $0xa0] sm:$0xff]
        %v292 = vld [vmem:[%s175 + $0xa8] sm:$0xff]
        %v293 = vld [vmem:[%s175 + $0xb0] sm:$0xff]
        %v294 = vld [vmem:[%s175 + $0xb8] sm:$0xff]
        %v295 = vld [vmem:[%s175 + $0xc0] sm:$0xff]
        %v296 = vld [vmem:[%s175 + $0xc8] sm:$0xff]
        %v297 = vld [vmem:[%s175 + $0xd0] sm:$0xff]
        %v298 = vld [vmem:[%s175 + $0xd8] sm:$0xff]
        %v299 = vld [vmem:[%s175 + $0xe0] sm:$0xff]
        %v300 = vld [vmem:[%s175 + $0xe8] sm:$0xff]
        %v301 = vld [vmem:[%s175 + $0xf0] sm:$0xff]
        %v302 = vld [vmem:[%s175 + $0xf8] sm:$0xff]
        %v303 = vld [vmem:[#allocation6] sm:$0xff]
        %v304 = vld [vmem:[#allocation6 + $0x8] sm:$0xff]
        %v305 = vld [vmem:[#allocation6 + $0x10] sm:$0xff]
        %v306 = vld [vmem:[#allocation6 + $0x18] sm:$0xff]
        %v307 = vld [vmem:[#allocation6 + $0x20] sm:$0xff]
        %v308 = vld [vmem:[#allocation6 + $0x28] sm:$0xff]
        %v309 = vld [vmem:[#allocation6 + $0x30] sm:$0xff]
        %v310 = vld [vmem:[#allocation6 + $0x38] sm:$0xff]
        %v311 = vld [vmem:[#allocation6 + $0x40] sm:$0xff]
        %v312 = vld [vmem:[#allocation6 + $0x48] sm:$0xff]
        %v313 = vld [vmem:[#allocation6 + $0x50] sm:$0xff]
        %v314 = vld [vmem:[#allocation6 + $0x58] sm:$0xff]
        %v315 = vld [vmem:[#allocation6 + $0x60] sm:$0xff]
        %v316 = vld [vmem:[#allocation6 + $0x68] sm:$0xff]
        %v317 = vld [vmem:[#allocation6 + $0x70] sm:$0xff]
        %v318 = vld [vmem:[#allocation6 + $0x78] sm:$0xff]
        %319 = vmatprep.subr.mxu0 0.0
        %320 = vmatpush1.msra.mxu0 %v303
        %321 = vmatprep.subr.mxu0 0.0
        %322 = vmatpush1.msra.mxu0 %v304
        %323 = vmatprep.subr.mxu0 0.0
        %324 = vmatpush1.msra.mxu0 %v305
        %325 = vmatprep.subr.mxu0 0.0
        %326 = vmatpush1.msra.mxu0 %v306
        %327 = vmatprep.subr.mxu0 0.0
        %328 = vmatpush1.msra.mxu0 %v307
        %329 = vmatprep.subr.mxu0 0.0
        %330 = vmatpush1.msra.mxu0 %v308
        %331 = vmatprep.subr.mxu0 0.0
        %332 = vmatpush1.msra.mxu0 %v309
        %333 = vmatprep.subr.mxu0 0.0
        %334 = vmatpush1.msra.mxu0 %v310
        %335 = vmatprep.subr.mxu0 0.0
        %336 = vmatpush1.msra.mxu0 %v311
        %337 = vmatprep.subr.mxu0 0.0
        %338 = vmatpush1.msra.mxu0 %v312
        %339 = vmatprep.subr.mxu0 0.0
        %340 = vmatpush1.msra.mxu0 %v313
        %341 = vmatprep.subr.mxu0 0.0
        %342 = vmatpush1.msra.mxu0 %v314
        %343 = vmatprep.subr.mxu0 0.0
        %344 = vmatpush1.msra.mxu0 %v315
        %345 = vmatprep.subr.mxu0 0.0
        %346 = vmatpush1.msra.mxu0 %v316
        %347 = vmatprep.subr.mxu0 0.0
        %348 = vmatpush1.msra.mxu0 %v317
        %349 = vmatprep.subr.mxu0 0.0
        %350 = vmatpush1.msra.mxu0 %v318
        %351 = vmatprep.subr.mxu0 0.0
        %352 = vmatpush1.msra.mxu0 0.0
        %353 = vmatprep.subr.mxu0 0.0
        %354 = vmatpush1.msra.mxu0 0.0
        %355 = vmatprep.subr.mxu0 0.0
        %356 = vmatpush1.msra.mxu0 0.0
        %357 = vmatprep.subr.mxu0 0.0
        %358 = vmatpush1.msra.mxu0 0.0
        %359 = vmatprep.subr.mxu0 0.0
        %360 = vmatpush1.msra.mxu0 0.0
        %361 = vmatprep.subr.mxu0 0.0
        %362 = vmatpush1.msra.mxu0 0.0
        %363 = vmatprep.subr.mxu0 0.0
        %364 = vmatpush1.msra.mxu0 0.0
        %365 = vmatprep.subr.mxu0 0.0
        %366 = vmatpush1.msra.mxu0 0.0
        %367 = vmatprep.subr.mxu0 0.0
        %368 = vmatpush1.msra.mxu0 0.0
        %369 = vmatprep.subr.mxu0 0.0
        %370 = vmatpush1.msra.mxu0 0.0
        %371 = vmatprep.subr.mxu0 0.0
        %372 = vmatpush1.msra.mxu0 0.0
        %373 = vmatprep.subr.mxu0 0.0
        %374 = vmatpush1.msra.mxu0 0.0
        %375 = vmatprep.subr.mxu0 0.0
        %376 = vmatpush1.msra.mxu0 0.0
        %377 = vmatprep.subr.mxu0 0.0
        %378 = vmatpush1.msra.mxu0 0.0
        %379 = vmatprep.subr.mxu0 0.0
        %380 = vmatpush1.msra.mxu0 0.0
        %381 = vmatprep.subr.mxu0 0.0
        %382 = vmatpush1.msra.mxu0 0.0
        %383 = vmatprep.mubr.f32.mxu0 0.0
        %384 = vmatmul.mubr.f32.gmra.mrb[0].mxu0 %v271
        %v385 = vpop.f32.mrb[0].mxu0
        %v386 = vadd.f32 0.0, %v385
        %v387 = vpop.f32.mrb[0].mxu0
        %388 = vmatprep.mubr.f32.mxu0 0.0
        %389 = vmatmul.mubr.f32.gmra.mrb[0].mxu0 %v272
        %v390 = vpop.f32.mrb[0].mxu0
        %v391 = vadd.f32 0.0, %v390
        %v392 = vpop.f32.mrb[0].mxu0
        %393 = vmatprep.mubr.f32.mxu0 0.0
        %394 = vmatmul.mubr.f32.gmra.mrb[0].mxu0 %v273
        %v395 = vpop.f32.mrb[0].mxu0
        %v396 = vadd.f32 0.0, %v395
        %v397 = vpop.f32.mrb[0].mxu0
        %398 = vmatprep.mubr.f32.mxu0 0.0
        %399 = vmatmul.mubr.f32.gmra.mrb[0].mxu0 %v274
        %v400 = vpop.f32.mrb[0].mxu0
        %v401 = vadd.f32 0.0, %v400
        %v402 = vpop.f32.mrb[0].mxu0
        %403 = vmatprep.mubr.f32.mxu0 0.0
        %404 = vmatmul.mubr.f32.gmra.mrb[0].mxu0 %v275
        %v405 = vpop.f32.mrb[0].mxu0
        %v406 = vadd.f32 0.0, %v405
        %v407 = vpop.f32.mrb[0].mxu0
        %408 = vmatprep.mubr.f32.mxu0 0.0
        %409 = vmatmul.mubr.f32.gmra.mrb[0].mxu0 %v276
        %v410 = vpop.f32.mrb[0].mxu0
        %v411 = vadd.f32 0.0, %v410
        %v412 = vpop.f32.mrb[0].mxu0
        %413 = vmatprep.mubr.f32.mxu0 0.0
        %414 = vmatmul.mubr.f32.gmra.mrb[0].mxu0 %v277
        %v415 = vpop.f32.mrb[0].mxu0
        %v416 = vadd.f32 0.0, %v415
        %v417 = vpop.f32.mrb[0].mxu0
        %418 = vmatprep.mubr.f32.mxu0 0.0
        %419 = vmatmul.mubr.f32.gmra.mrb[0].mxu0 %v278
        %v420 = vpop.f32.mrb[0].mxu0
        %v421 = vadd.f32 0.0, %v420
        %v422 = vpop.f32.mrb[0].mxu0
        %423 = vmatprep.mubr.f32.mxu0 0.0
        %424 = vmatmul.mubr.f32.gmra.mrb[0].mxu0 %v279
        %v425 = vpop.f32.mrb[0].mxu0
        %v426 = vadd.f32 0.0, %v425
        %v427 = vpop.f32.mrb[0].mxu0
        %428 = vmatprep.mubr.f32.mxu0 0.0
        %429 = vmatmul.mubr.f32.gmra.mrb[0].mxu0 %v280
        %v430 = vpop.f32.mrb[0].mxu0
        %v431 = vadd.f32 0.0, %v430
        %v432 = vpop.f32.mrb[0].mxu0
        %433 = vmatprep.mubr.f32.mxu0 0.0
        %434 = vmatmul.mubr.f32.gmra.mrb[0].mxu0 %v281
        %v435 = vpop.f32.mrb[0].mxu0
        %v436 = vadd.f32 0.0, %v435
        %v437 = vpop.f32.mrb[0].mxu0
        %438 = vmatprep.mubr.f32.mxu0 0.0
        %439 = vmatmul.mubr.f32.gmra.mrb[0].mxu0 %v282
        %v440 = vpop.f32.mrb[0].mxu0
        %v441 = vadd.f32 0.0, %v440
        %v442 = vpop.f32.mrb[0].mxu0
        %443 = vmatprep.mubr.f32.mxu0 0.0
        %444 = vmatmul.mubr.f32.gmra.mrb[0].mxu0 %v283
        %v445 = vpop.f32.mrb[0].mxu0
        %v446 = vadd.f32 0.0, %v445
        %v447 = vpop.f32.mrb[0].mxu0
        %448 = vmatprep.mubr.f32.mxu0 0.0
        %449 = vmatmul.mubr.f32.gmra.mrb[0].mxu0 %v284
        %v450 = vpop.f32.mrb[0].mxu0
        %v451 = vadd.f32 0.0, %v450
        %v452 = vpop.f32.mrb[0].mxu0
        %453 = vmatprep.mubr.f32.mxu0 0.0
        %454 = vmatmul.mubr.f32.gmra.mrb[0].mxu0 %v285
        %v455 = vpop.f32.mrb[0].mxu0
        %v456 = vadd.f32 0.0, %v455
        %v457 = vpop.f32.mrb[0].mxu0
        %458 = vmatprep.mubr.f32.mxu0 0.0
        %459 = vmatmul.mubr.f32.gmra.mrb[0].mxu0 %v286
        %v460 = vpop.f32.mrb[0].mxu0
        %v461 = vadd.f32 0.0, %v460
        %v462 = vpop.f32.mrb[0].mxu0
        %463 = vmatprep.mubr.f32.mxu0 0.0
        %464 = vmatmul.mubr.f32.gmra.mrb[0].mxu0 %v287
        %v465 = vpop.f32.mrb[0].mxu0
        %v466 = vadd.f32 0.0, %v465
        %v467 = vpop.f32.mrb[0].mxu0
        %468 = vmatprep.mubr.f32.mxu0 0.0
        %469 = vmatmul.mubr.f32.gmra.mrb[0].mxu0 %v288
        %v470 = vpop.f32.mrb[0].mxu0
        %v471 = vadd.f32 0.0, %v470
        %v472 = vpop.f32.mrb[0].mxu0
        %473 = vmatprep.mubr.f32.mxu0 0.0
        %474 = vmatmul.mubr.f32.gmra.mrb[0].mxu0 %v289
        %v475 = vpop.f32.mrb[0].mxu0
        %v476 = vadd.f32 0.0, %v475
        %v477 = vpop.f32.mrb[0].mxu0
        %478 = vmatprep.mubr.f32.mxu0 0.0
        %479 = vmatmul.mubr.f32.gmra.mrb[0].mxu0 %v290
        %v480 = vpop.f32.mrb[0].mxu0
        %v481 = vadd.f32 0.0, %v480
        %v482 = vpop.f32.mrb[0].mxu0
        %483 = vmatprep.mubr.f32.mxu0 0.0
        %484 = vmatmul.mubr.f32.gmra.mrb[0].mxu0 %v291
        %v485 = vpop.f32.mrb[0].mxu0
        %v486 = vadd.f32 0.0, %v485
        %v487 = vpop.f32.mrb[0].mxu0
        %488 = vmatprep.mubr.f32.mxu0 0.0
        %489 = vmatmul.mubr.f32.gmra.mrb[0].mxu0 %v292
        %v490 = vpop.f32.mrb[0].mxu0
        %v491 = vadd.f32 0.0, %v490
        %v492 = vpop.f32.mrb[0].mxu0
        %493 = vmatprep.mubr.f32.mxu0 0.0
        %494 = vmatmul.mubr.f32.gmra.mrb[0].mxu0 %v293
        %v495 = vpop.f32.mrb[0].mxu0
        %v496 = vadd.f32 0.0, %v495
        %v497 = vpop.f32.mrb[0].mxu0
        %498 = vmatprep.mubr.f32.mxu0 0.0
        %499 = vmatmul.mubr.f32.gmra.mrb[0].mxu0 %v294
        %v500 = vpop.f32.mrb[0].mxu0
        %v501 = vadd.f32 0.0, %v500
        %v502 = vpop.f32.mrb[0].mxu0
        %503 = vmatprep.mubr.f32.mxu0 0.0
        %504 = vmatmul.mubr.f32.gmra.mrb[0].mxu0 %v295
        %v505 = vpop.f32.mrb[0].mxu0
        %v506 = vadd.f32 0.0, %v505
        %v507 = vpop.f32.mrb[0].mxu0
        %508 = vmatprep.mubr.f32.mxu0 0.0
        %509 = vmatmul.mubr.f32.gmra.mrb[0].mxu0 %v296
        %v510 = vpop.f32.mrb[0].mxu0
        %v511 = vadd.f32 0.0, %v510
        %v512 = vpop.f32.mrb[0].mxu0
        %513 = vmatprep.mubr.f32.mxu0 0.0
        %514 = vmatmul.mubr.f32.gmra.mrb[0].mxu0 %v297
        %v515 = vpop.f32.mrb[0].mxu0
        %v516 = vadd.f32 0.0, %v515
        %v517 = vpop.f32.mrb[0].mxu0
        %518 = vmatprep.mubr.f32.mxu0 0.0
        %519 = vmatmul.mubr.f32.gmra.mrb[0].mxu0 %v298
        %v520 = vpop.f32.mrb[0].mxu0
        %v521 = vadd.f32 0.0, %v520
        %v522 = vpop.f32.mrb[0].mxu0
        %523 = vmatprep.mubr.f32.mxu0 0.0
        %524 = vmatmul.mubr.f32.gmra.mrb[0].mxu0 %v299
        %v525 = vpop.f32.mrb[0].mxu0
        %v526 = vadd.f32 0.0, %v525
        %v527 = vpop.f32.mrb[0].mxu0
        %528 = vmatprep.mubr.f32.mxu0 0.0
        %529 = vmatmul.mubr.f32.gmra.mrb[0].mxu0 %v300
        %v530 = vpop.f32.mrb[0].mxu0
        %v531 = vadd.f32 0.0, %v530
        %v532 = vpop.f32.mrb[0].mxu0
        %533 = vmatprep.mubr.f32.mxu0 0.0
        %534 = vmatmul.mubr.f32.gmra.mrb[0].mxu0 %v301
        %v535 = vpop.f32.mrb[0].mxu0
        %v536 = vadd.f32 0.0, %v535
        %v537 = vpop.f32.mrb[0].mxu0
        %538 = vmatprep.mubr.f32.mxu0 0.0
        %539 = vmatmul.mubr.f32.gmra.mrb[0].mxu0 %v302
        %v540 = vpop.f32.mrb[0].mxu0
        %v541 = vadd.f32 0.0, %v540
        %v542 = vpop.f32.mrb[0].mxu0
        %543 = vdwg.mxu0
        %v544 = vadd.f32 %v239, %v386
        %v545 = vadd.f32 %v240, %v391
        %v546 = vadd.f32 %v241, %v396
        %v547 = vadd.f32 %v242, %v401
        %v548 = vadd.f32 %v243, %v406
        %v549 = vadd.f32 %v244, %v411
        %v550 = vadd.f32 %v245, %v416
        %v551 = vadd.f32 %v246, %v421
        %v552 = vadd.f32 %v247, %v426
        %v553 = vadd.f32 %v248, %v431
        %v554 = vadd.f32 %v249, %v436
        %v555 = vadd.f32 %v250, %v441
        %v556 = vadd.f32 %v251, %v446
        %v557 = vadd.f32 %v252, %v451
        %v558 = vadd.f32 %v253, %v456
        %v559 = vadd.f32 %v254, %v461
        %v560 = vadd.f32 %v255, %v466
        %v561 = vadd.f32 %v256, %v471
        %v562 = vadd.f32 %v257, %v476
        %v563 = vadd.f32 %v258, %v481
        %v564 = vadd.f32 %v259, %v486
        %v565 = vadd.f32 %v260, %v491
        %v566 = vadd.f32 %v261, %v496
        %v567 = vadd.f32 %v262, %v501
        %v568 = vadd.f32 %v263, %v506
        %v569 = vadd.f32 %v264, %v511
        %v570 = vadd.f32 %v265, %v516
        %v571 = vadd.f32 %v266, %v521
        %v572 = vadd.f32 %v267, %v526
        %v573 = vadd.f32 %v268, %v531
        %v574 = vadd.f32 %v269, %v536
        %v575 = vadd.f32 %v270, %v541
        %576 = vst [vmem:[#allocation2] sm:$0xff] %v544
        %577 = vst [vmem:[#allocation2 + $0x8] sm:$0xff] %v545
        %578 = vst [vmem:[#allocation2 + $0x10] sm:$0xff] %v546
        %579 = vst [vmem:[#allocation2 + $0x18] sm:$0xff] %v547
        %580 = vst [vmem:[#allocation2 + $0x20] sm:$0xff] %v548
        %581 = vst [vmem:[#allocation2 + $0x28] sm:$0xff] %v549
        %582 = vst [vmem:[#allocation2 + $0x30] sm:$0xff] %v550
        %583 = vst [vmem:[#allocation2 + $0x38] sm:$0xff] %v551
        %584 = vst [vmem:[#allocation2 + $0x40] sm:$0xff] %v552
        %585 = vst [vmem:[#allocation2 + $0x48] sm:$0xff] %v553
        %586 = vst [vmem:[#allocation2 + $0x50] sm:$0xff] %v554
        %587 = vst [vmem:[#allocation2 + $0x58] sm:$0xff] %v555
        %588 = vst [vmem:[#allocation2 + $0x60] sm:$0xff] %v556
        %589 = vst [vmem:[#allocation2 + $0x68] sm:$0xff] %v557
        %590 = vst [vmem:[#allocation2 + $0x70] sm:$0xff] %v558
        %591 = vst [vmem:[#allocation2 + $0x78] sm:$0xff] %v559
        %592 = vst [vmem:[#allocation2 + $0x80] sm:$0xff] %v560
        %593 = vst [vmem:[#allocation2 + $0x88] sm:$0xff] %v561
        %594 = vst [vmem:[#allocation2 + $0x90] sm:$0xff] %v562
        %595 = vst [vmem:[#allocation2 + $0x98] sm:$0xff] %v563
        %596 = vst [vmem:[#allocation2 + $0xa0] sm:$0xff] %v564
        %597 = vst [vmem:[#allocation2 + $0xa8] sm:$0xff] %v565
        %598 = vst [vmem:[#allocation2 + $0xb0] sm:$0xff] %v566
        %599 = vst [vmem:[#allocation2 + $0xb8] sm:$0xff] %v567
        %600 = vst [vmem:[#allocation2 + $0xc0] sm:$0xff] %v568
        %601 = vst [vmem:[#allocation2 + $0xc8] sm:$0xff] %v569
        %602 = vst [vmem:[#allocation2 + $0xd0] sm:$0xff] %v570
        %603 = vst [vmem:[#allocation2 + $0xd8] sm:$0xff] %v571
        %604 = vst [vmem:[#allocation2 + $0xe0] sm:$0xff] %v572
        %605 = vst [vmem:[#allocation2 + $0xe8] sm:$0xff] %v573
        %606 = vst [vmem:[#allocation2 + $0xf0] sm:$0xff] %v574
        %607 = vst [vmem:[#allocation2 + $0xf8] sm:$0xff] %v575
        // Predicated region
        $region41: #{tpu_custom_call.1} parent=27 // pred_check
          %p608 = pneg %p203
        $region42: #{tpu_custom_call.1} parent=27 // pred_check_branch
          %610 = sbr.rel (%p608) target = $region44
        $region43: #{tpu_custom_call.1} parent=27 // pred_region
          %v611 = vld [vmem:[#allocation2] sm:$0xff]
          %v612 = vld [vmem:[#allocation2 + $0x8] sm:$0xff]
          %v613 = vld [vmem:[#allocation2 + $0x10] sm:$0xff]
          %v614 = vld [vmem:[#allocation2 + $0x18] sm:$0xff]
          %v615 = vld [vmem:[#allocation2 + $0x20] sm:$0xff]
          %v616 = vld [vmem:[#allocation2 + $0x28] sm:$0xff]
          %v617 = vld [vmem:[#allocation2 + $0x30] sm:$0xff]
          %v618 = vld [vmem:[#allocation2 + $0x38] sm:$0xff]
          %v619 = vld [vmem:[#allocation2 + $0x40] sm:$0xff]
          %v620 = vld [vmem:[#allocation2 + $0x48] sm:$0xff]
          %v621 = vld [vmem:[#allocation2 + $0x50] sm:$0xff]
          %v622 = vld [vmem:[#allocation2 + $0x58] sm:$0xff]
          %v623 = vld [vmem:[#allocation2 + $0x60] sm:$0xff]
          %v624 = vld [vmem:[#allocation2 + $0x68] sm:$0xff]
          %v625 = vld [vmem:[#allocation2 + $0x70] sm:$0xff]
          %v626 = vld [vmem:[#allocation2 + $0x78] sm:$0xff]
          %v627 = vld [vmem:[#allocation2 + $0x80] sm:$0xff]
          %v628 = vld [vmem:[#allocation2 + $0x88] sm:$0xff]
          %v629 = vld [vmem:[#allocation2 + $0x90] sm:$0xff]
          %v630 = vld [vmem:[#allocation2 + $0x98] sm:$0xff]
          %v631 = vld [vmem:[#allocation2 + $0xa0] sm:$0xff]
          %v632 = vld [vmem:[#allocation2 + $0xa8] sm:$0xff]
          %v633 = vld [vmem:[#allocation2 + $0xb0] sm:$0xff]
          %v634 = vld [vmem:[#allocation2 + $0xb8] sm:$0xff]
          %v635 = vld [vmem:[#allocation2 + $0xc0] sm:$0xff]
          %v636 = vld [vmem:[#allocation2 + $0xc8] sm:$0xff]
          %v637 = vld [vmem:[#allocation2 + $0xd0] sm:$0xff]
          %v638 = vld [vmem:[#allocation2 + $0xd8] sm:$0xff]
          %v639 = vld [vmem:[#allocation2 + $0xe0] sm:$0xff]
          %v640 = vld [vmem:[#allocation2 + $0xe8] sm:$0xff]
          %v641 = vld [vmem:[#allocation2 + $0xf0] sm:$0xff]
          %v642 = vld [vmem:[#allocation2 + $0xf8] sm:$0xff]
          %643 = vst [vmem:[%s199] sm:$0xff] %v611
          %644 = vst [vmem:[%s199 + $0x8] sm:$0xff] %v612
          %645 = vst [vmem:[%s199 + $0x10] sm:$0xff] %v613
          %646 = vst [vmem:[%s199 + $0x18] sm:$0xff] %v614
          %647 = vst [vmem:[%s199 + $0x20] sm:$0xff] %v615
          %648 = vst [vmem:[%s199 + $0x28] sm:$0xff] %v616
          %649 = vst [vmem:[%s199 + $0x30] sm:$0xff] %v617
          %650 = vst [vmem:[%s199 + $0x38] sm:$0xff] %v618
          %651 = vst [vmem:[%s199 + $0x40] sm:$0xff] %v619
          %652 = vst [vmem:[%s199 + $0x48] sm:$0xff] %v620
          %653 = vst [vmem:[%s199 + $0x50] sm:$0xff] %v621
          %654 = vst [vmem:[%s199 + $0x58] sm:$0xff] %v622
          %655 = vst [vmem:[%s199 + $0x60] sm:$0xff] %v623
          %656 = vst [vmem:[%s199 + $0x68] sm:$0xff] %v624
          %657 = vst [vmem:[%s199 + $0x70] sm:$0xff] %v625
          %658 = vst [vmem:[%s199 + $0x78] sm:$0xff] %v626
          %659 = vst [vmem:[%s199 + $0x80] sm:$0xff] %v627
          %660 = vst [vmem:[%s199 + $0x88] sm:$0xff] %v628
          %661 = vst [vmem:[%s199 + $0x90] sm:$0xff] %v629
          %662 = vst [vmem:[%s199 + $0x98] sm:$0xff] %v630
          %663 = vst [vmem:[%s199 + $0xa0] sm:$0xff] %v631
          %664 = vst [vmem:[%s199 + $0xa8] sm:$0xff] %v632
          %665 = vst [vmem:[%s199 + $0xb0] sm:$0xff] %v633
          %666 = vst [vmem:[%s199 + $0xb8] sm:$0xff] %v634
          %667 = vst [vmem:[%s199 + $0xc0] sm:$0xff] %v635
          %668 = vst [vmem:[%s199 + $0xc8] sm:$0xff] %v636
          %669 = vst [vmem:[%s199 + $0xd0] sm:$0xff] %v637
          %670 = vst [vmem:[%s199 + $0xd8] sm:$0xff] %v638
          %671 = vst [vmem:[%s199 + $0xe0] sm:$0xff] %v639
          %672 = vst [vmem:[%s199 + $0xe8] sm:$0xff] %v640
          %673 = vst [vmem:[%s199 + $0xf0] sm:$0xff] %v641
          %674 = vst [vmem:[%s199 + $0xf8] sm:$0xff] %v642
        $region44: #{tpu_custom_call.1} parent=27 // pred_fallthru
          _
        %s675 = sand.u32 %s94, 1
        %s676 = scalar_lea.sflag [#allocation5], %s675
        %s677 = sand.u32 %s94, 1
        %s678 = smul.addr %s677, 256
        %s679 = scalar_lea.vmem [#allocation8], %s678
        // Predicated region
        $region45: #{tpu_custom_call.1} parent=27 // pred_check
          %p680 = pneg %p104
        $region46: #{tpu_custom_call.1} parent=27 // pred_check_branch
          %682 = sbr.rel (%p680) target = $region48
        $region47: #{tpu_custom_call.1} parent=27 // pred_region
          %s683 = smul.u32 32, %s24
          %s685 = ssub.s32 4096, 4096
          %686 = vsyncadd %s676, %s685
          %s687 = smul.addr %s683, 128
          %s688 = scalar_lea.hbm %s2, %s687
          %s689 = sshll.u32 %s679, 4
          %s690 = int_to_ptr.vmem [resolvable:$true] %s689
          %695 = dma.vmem_to_hbm [thread:$0]  %s690, 4096, %s688, %s676, 128, 128, 8
        $region48: #{tpu_custom_call.1} parent=27 // pred_fallthru
          _
      $region28: #{tpu_custom_call.1} parent=5 // pred_fallthru
        _
      %p696 = scmp.le.s32.totalorder 2, %s15
      // Predicated region
      $region49: #{tpu_custom_call.1} parent=5 // pred_check
        %p697 = pneg %p696
      $region50: #{tpu_custom_call.1} parent=5 // pred_check_branch
        %699 = sbr.rel (%p697) target = $region52
      $region51: #{tpu_custom_call.1} parent=5 // pred_region
        %s700 = ssub.s32 %s15, 2
        // Predicated region
        $region53: #{tpu_custom_call.1} parent=51 // pred_check
          %p701 = pneg %p110
        $region54: #{tpu_custom_call.1} parent=51 // pred_check_branch
          %703 = sbr.rel (%p701) target = $region56
        $region55: #{tpu_custom_call.1} parent=51 // pred_region
          %s704 = sand.u32 %s95, 1
          %s705 = scalar_lea.sflag [#allocation5], %s704
          %s706 = sand.u32 %s95, 1
          %s707 = smul.addr %s706, 256
          %s708 = scalar_lea.vmem [#allocation8], %s707
          %709 = dma.done %s705, 4096
        $region56: #{tpu_custom_call.1} parent=51 // pred_fallthru
          _
      $region52: #{tpu_custom_call.1} parent=5 // pred_fallthru
        _
    $region6: #{tpu_custom_call.1} parent=1 // loop_footer
      %s19 = sadd.s32 1, %s15
    $region7: #{tpu_custom_call.1} parent=1 // loop_footer_branch
      %14 = sbr.rel target = $region3
    $region8: #{tpu_custom_call.1} parent=1 // loop_exit
      _
    %710 = vsyncpa [#allocation4], 1
    %s711 = scalar_lea.sflag [#allocation4], 1
    %712 = vsyncpa %s711, 1
    %713 = vsyncpa [#allocation7], 1
    %714 = vsyncpa [#allocation5], 1
    %s715 = scalar_lea.sflag [#allocation5], 1
    %716 = vsyncpa %s715, 1

</llo_original>
